<compile_context>
chip_gen: v6e
topology: v6e:2x2x1
jax: 0.10.0
libtpu: 0.0.40
codegen_flags: <defaults>
</compile_context>

<pallas_src>
import functools

import jax
import jax.numpy as jnp
from jax.experimental import pallas as pl
from jax.experimental.pallas import tpu as pltpu

_LANE = 128        # pad the class dim to full lane width (dense stores, full MXU tile)
_NEG_BIG = -1e30   # bias padding -> padded classes contribute exp(-inf-ish)=0 to softmax


def _round_up(x, m):
    return (x + m - 1) // m * m


def _full_spec(shape):
    nd = len(shape)
    return pl.BlockSpec(shape, lambda *args, _nd=nd: (0,) * _nd)


def _choose_tile_n(N, C, itemsize, tile_n=None, max_tile=512, budget_bytes=2 << 20):
    """Patch-axis tile: a multiple of 8 that divides N, sized so the x tile stays around
    `budget_bytes` (conservative for v7x's 64 MiB VMEM; on v6e/v5e larger tiles / a higher
    vmem_limit_bytes can be used).  Tiny / irregular stages fall back to a single block."""
    if N % 8 != 0:
        return N
    if tile_n is None:
        rows = max(8, (budget_bytes // max(1, C * itemsize)) // 8 * 8)
        tile_n = min(max_tile, rows)
    t = max(8, min(N, (tile_n // 8) * 8))
    while N % t:
        t -= 8
    return t


# --------------------------------------------------------------------------------------
# Kernels
# --------------------------------------------------------------------------------------
def wss_kernel(x_ref, w_ref, b_ref, scores_ref, mean_ref, *, n_total):
    """WSS hot path for one patch tile.

    x_ref:      (B, TN, C)   patch tile of the flattened feature map
    w_ref:      (C, Kp)      fc weight, class dim zero-padded to Kp=128
    b_ref:      (1, Kp)      fc bias, padded classes = -1e30
    scores_ref: (B, TN)      max softmax prob per patch  (== 1 / sum(exp(pred - max)))
    mean_ref:   (B, Kp)      resident accumulator; ends up mean of pred over all patches
    """
    n = pl.program_id(0)
    x = x_ref[...]
    w = w_ref[...]
    b = b_ref[...].astype(jnp.float32)
    B, TN, C = x.shape
    Kp = w.shape[1]

    # fc: fold batch into a single MXU matmul when the tile is sublane-aligned.
    if TN % 8 == 0:
        pred = jnp.dot(x.reshape(B * TN, C), w, preferred_element_type=jnp.float32) + b
        pred = pred.reshape(B, TN, Kp)
    else:
        pred = jnp.einsum("bnc,ck->bnk", x, w, preferred_element_type=jnp.float32) + b[None]

    # max softmax prob = 1 / sum(exp(pred - max)): padded classes (bias -1e30) contribute 0.
    m = jnp.max(pred, axis=-1, keepdims=True)
    s = jnp.sum(jnp.exp(pred - m), axis=-1)            # (B, TN)
    scores_ref[...] = pl.reciprocal(s, approx=False)

    # classify head (mean over patches of pred): accumulate per-tile partial sums.
    part = jnp.sum(pred, axis=1)                       # (B, Kp)

    @pl.when(n == 0)
    def _init():
        mean_ref[...] = jnp.zeros_like(mean_ref)

    mean_ref[...] += part

    @pl.when(n == pl.num_programs(0) - 1)
    def _finalize():
        mean_ref[...] *= jnp.float32(1.0 / n_total)


def fused_classifier_kernel(*refs):
    """Final HERBS classifier with the per-stage AdaptiveAvgPool1d folded into the weights:
    out = sum_stage sel_flat_stage @ w_fold_stage + b.

    refs = (x_0..x_{S-1}, w_0..w_{S-1}, b, out);  x_i: (B, S*C_i), w_i: (S*C_i, Kp).
    """
    n_stage = (len(refs) - 2) // 2
    x_refs = refs[:n_stage]
    w_refs = refs[n_stage:2 * n_stage]
    b_ref = refs[2 * n_stage]
    o_ref = refs[2 * n_stage + 1]

    acc = jnp.dot(x_refs[0][...], w_refs[0][...], preferred_element_type=jnp.float32)
    for x_r, w_r in zip(x_refs[1:], w_refs[1:]):
        acc = acc + jnp.dot(x_r[...], w_r[...], preferred_element_type=jnp.float32)
    o_ref[...] = (acc + b_ref[...].astype(jnp.float32)).astype(o_ref.dtype)


# --------------------------------------------------------------------------------------
# Wrappers (pallas_call plumbing + data-dependent glue)
# --------------------------------------------------------------------------------------
def wss_forward(x_nhwc, w_pad, b_pad, num_selects, tile_n=None):
    """One WSS suppressor (class dim already padded to a multiple of 128).

    Returns (classify pred over padded classes (B, Kp), gathered selected rows (B, S, C))."""
    B, H, W_, C = x_nhwc.shape
    N = H * W_
    Kp = w_pad.shape[1]
    x_flat = x_nhwc.reshape(B, N, C)

    tn = _choose_tile_n(N, C, x_nhwc.dtype.itemsize, tile_n)
    grid = (N // tn,)

    cost = pl.CostEstimate(
        flops=2 * B * N * C * Kp + 6 * B * N * Kp,
        transcendentals=B * N * Kp,
        bytes_accessed=(B * N * C + C * Kp + Kp) * x_nhwc.dtype.itemsize
        + (B * N + B * Kp) * 4,
    )

    scores, pred_mean = pl.pallas_call(
        functools.partial(wss_kernel, n_total=N),
        out_shape=(
            jax.ShapeDtypeStruct((B, N), jnp.float32),
            jax.ShapeDtypeStruct((B, Kp), jnp.float32),
        ),
        grid=grid,
        in_specs=[
            pl.BlockSpec((B, tn, C), lambda n: (0, n, 0)),
            pl.BlockSpec((C, Kp), lambda n: (0, 0)),
            pl.BlockSpec((1, Kp), lambda n: (0, 0)),
        ],
        out_specs=(
            pl.BlockSpec((B, tn), lambda n: (0, n)),
            pl.BlockSpec((B, Kp), lambda n: (0, 0)),   # resident accumulator across N axis
        ),
        compiler_params=pltpu.CompilerParams(dimension_semantics=("arbitrary",)),
        cost_estimate=cost,
    )(x_flat, w_pad, b_pad)

    # torch.sort(descending=True)[:, :S] == top_k (descending).  Data-dependent gather
    # stays in plain-JAX glue.
    # TODO(synk): at production shapes, replace with a scalar-prefetch
    # (PrefetchScalarGridSpec) row gather that DMAs only the selected rows into VMEM.
    _, idx = jax.lax.top_k(scores, num_selects)                      # (B, S)
    selected = jnp.take_along_axis(x_flat, idx[..., None], axis=1)   # (B, S, C)
    return pred_mean, selected


def herbs_forward(features, wss_params, clf_w, clf_b, num_selects, out_embedding_size,
                  tile_n=None):
    """HERBS head: 4 WSS suppressors + fused (pool ∘ classifier) over gathered selections.

    TODO(synk): the pretrained swin backbone (timm create_model) is not translated;
    `features` are its 4 stage outputs (NHWC) supplied directly.
    """
    K = clf_w.shape[1]
    Kp = _round_up(K, _LANE)
    B = features[0].shape[0]

    clf_w_p = jnp.pad(clf_w, ((0, 0), (0, Kp - K)))
    clf_b_p = jnp.pad(clf_b, (0, Kp - K)).reshape(1, Kp).astype(jnp.float32)

    suppressor_preds, sel_flats, folded_ws = [], [], []
    row_off = 0
    for (w, b), x in zip(wss_params, features):
        C = x.shape[-1]
        w_p = jnp.pad(w, ((0, 0), (0, Kp - K)))
        b_p = jnp.pad(b, (0, Kp - K), constant_values=_NEG_BIG).reshape(1, Kp).astype(jnp.float32)

        pred_mean, selected = wss_forward(x, w_p, b_p, num_selects, tile_n)
        suppressor_preds.append(pred_mean[:, :K])
        sel_flats.append(selected.reshape(B, num_selects * C))

        # Fold AdaptiveAvgPool1d(out_embedding_size) — exact block averaging over C since
        # C % out == 0 — into this stage's rows of the classifier weight (linearity).
        ratio = C // out_embedding_size
        rows = num_selects * out_embedding_size
        w_stage = clf_w_p[row_off:row_off + rows].reshape(num_selects, out_embedding_size, Kp)
        w_fold = (jnp.repeat(w_stage, ratio, axis=1) / ratio).reshape(num_selects * C, Kp)
        folded_ws.append(w_fold.astype(jnp.float32))
        row_off += rows

    operands = (*sel_flats, *folded_ws, clf_b_p)
    logits_p = pl.pallas_call(
        fused_classifier_kernel,
        out_shape=jax.ShapeDtypeStruct((B, Kp), jnp.float32),
        grid=(1,),
        in_specs=[_full_spec(a.shape) for a in operands],
        out_specs=_full_spec((B, Kp)),
        compiler_params=pltpu.CompilerParams(dimension_semantics=("arbitrary",)),
    )(*operands)

    return (*suppressor_preds, logits_p[:, :K])


# --------------------------------------------------------------------------------------
# Pure-JAX reference for verification (faithful to the PyTorch spec)
# --------------------------------------------------------------------------------------
def herbs_reference(features, wss_params, clf_w, clf_b, num_selects, out_embedding_size):
    preds, pooled_list = [], []
    for (w, b), x in zip(wss_params, features):
        B, H, W_, C = x.shape
        xf = x.reshape(B, H * W_, C)
        pred = jnp.einsum("bnc,ck->bnk", xf, w) + b[None, None, :]
        logits = jax.nn.softmax(pred, axis=-1)
        scores = jnp.max(logits, axis=-1)
        _, idx = jax.lax.top_k(scores, num_selects)
        sel = jnp.take_along_axis(xf, idx[..., None], axis=1)
        ratio = C // out_embedding_size
        pooled = sel.reshape(B, num_selects, out_embedding_size, ratio).mean(axis=-1)
        preds.append(pred.mean(axis=1))
        pooled_list.append(pooled)
    selected = jnp.concatenate(pooled_list, axis=1)
    flat = selected.reshape(selected.shape[0], -1)
    return (*preds, flat @ clf_w + clf_b[None, :])


# --------------------------------------------------------------------------------------
# Main
# --------------------------------------------------------------------------------------
if __name__ == "__main__":
    key = jax.random.PRNGKey(0)

    B = 2
    num_classes = 8
    embedding_sizes = [16, 32, 64, 128]        # scaled-down swin stage widths
    spatial = [(16, 16), (8, 8), (4, 4), (2, 2)]
    num_selects = 4                            # per-stage selection count
    out_embedding_size = embedding_sizes[0]

    # Synthetic backbone feature maps (NHWC), deterministic.
    keys = jax.random.split(key, 16)
    features = []
    for i, ((h, w_), c) in enumerate(zip(spatial, embedding_sizes)):
        features.append(jax.random.normal(keys[i], (B, h, w_, c), dtype=jnp.float32))

    # WSS fc parameters per stage.
    wss_params = []
    for i, c in enumerate(embedding_sizes):
        w = jax.random.normal(keys[4 + i], (c, num_classes), dtype=jnp.float32) * 0.05
        b = jax.random.normal(keys[8 + i], (num_classes,), dtype=jnp.float32) * 0.01
        wss_params.append((w, b))

    # Final classifier.
    input_layer = 4 * num_selects * out_embedding_size
    clf_w = jax.random.normal(keys[12], (input_layer, num_classes), dtype=jnp.float32) * 0.05
    clf_b = jax.random.normal(keys[13], (num_classes,), dtype=jnp.float32) * 0.01

    # tile_n=128 exercises the multi-step (tiled) accumulation path on the largest stage.
    outs = herbs_forward(features, wss_params, clf_w, clf_b, num_selects,
                         out_embedding_size, tile_n=128)
    outs = jax.block_until_ready(outs)

    refs = herbs_reference(features, wss_params, clf_w, clf_b, num_selects, out_embedding_size)
    for o, r in zip(outs, refs):
        assert o.shape == r.shape, (o.shape, r.shape)
        err = float(jnp.max(jnp.abs(o - r)))
        assert err < 2e-4, err

    print("KERNEL_OK")
</pallas_src>

<mosaic_0001>
module attributes {stable_mosaic.version = 11 : i64} {
  func.func @wss_kernel(%arg0: i32, %arg1: memref<2x128x16xf32, #tpu.memory_space<vmem>>, %arg2: memref<16x128xf32, #tpu.memory_space<vmem>>, %arg3: memref<1x128xf32, #tpu.memory_space<vmem>>, %arg4: memref<2x128xf32, #tpu.memory_space<vmem>>, %arg5: memref<2x128xf32, #tpu.memory_space<vmem>>) attributes {dimension_semantics = [#tpu.dimension_semantics<arbitrary>], iteration_bounds = array<i64: 2>, scalar_prefetch = 0 : i64, scratch_operands = 0 : i64, tpu.core_type = #tpu.core_type<tc>, window_params = [{transform_indices = @transform_0, window_bounds = array<i64: 2, 128, 16>}, {pipeline_mode = #tpu.pipeline_mode<synchronous>, transform_indices = @transform_1, window_bounds = array<i64: 16, 128>}, {pipeline_mode = #tpu.pipeline_mode<synchronous>, transform_indices = @transform_2, window_bounds = array<i64: 1, 128>}, {transform_indices = @transform_3, window_bounds = array<i64: 2, 128>}, {pipeline_mode = #tpu.pipeline_mode<synchronous>, transform_indices = @transform_4, window_bounds = array<i64: 2, 128>}]} {
    %c0 = arith.constant 0 : index
    %c0_0 = arith.constant 0 : index
    %c0_1 = arith.constant 0 : index
    %0 = vector.load %arg1[%c0, %c0_0, %c0_1] : memref<2x128x16xf32, #tpu.memory_space<vmem>>, vector<2x128x16xf32>
    %c0_2 = arith.constant 0 : index
    %c0_3 = arith.constant 0 : index
    %1 = vector.load %arg2[%c0_2, %c0_3] : memref<16x128xf32, #tpu.memory_space<vmem>>, vector<16x128xf32>
    %c0_4 = arith.constant 0 : index
    %c0_5 = arith.constant 0 : index
    %2 = vector.load %arg3[%c0_4, %c0_5] : memref<1x128xf32, #tpu.memory_space<vmem>>, vector<1x128xf32>
    %3 = vector.shape_cast %0 : vector<2x128x16xf32> to vector<256x16xf32>
    %cst = arith.constant dense<0.000000e+00> : vector<256x128xf32>
    %4 = tpu.matmul %3, %1, %cst {dimension_numbers = #tpu.dot_dimension_numbers<[1], [0], [0], [1], [0, 0, 1, 1], [], []>} : vector<256x16xf32>, vector<16x128xf32>, vector<256x128xf32> -> vector<256x128xf32>
    %5 = vector.broadcast %2 : vector<1x128xf32> to vector<256x128xf32>
    %6 = arith.addf %4, %5 : vector<256x128xf32>
    %7 = vector.shape_cast %6 : vector<256x128xf32> to vector<2x128x128xf32>
    %cst_6 = arith.constant dense<0xFF800000> : vector<2x128xf32>
    %8 = vector.multi_reduction <maximumf>, %7, %cst_6 [2] : vector<2x128x128xf32> to vector<2x128xf32>
    %9 = vector.shape_cast %8 : vector<2x128xf32> to vector<2x128x1xf32>
    %10 = vector.broadcast %9 : vector<2x128x1xf32> to vector<2x128x128xf32>
    %11 = arith.subf %7, %10 : vector<2x128x128xf32>
    %12 = math.exp %11 : vector<2x128x128xf32>
    %cst_7 = arith.constant dense<0.000000e+00> : vector<2x128xf32>
    %13 = vector.multi_reduction <add>, %12, %cst_7 [2] : vector<2x128x128xf32> to vector<2x128xf32>
    %14 = tpu.reciprocal %13 : vector<2x128xf32> -> vector<2x128xf32>
    %c0_8 = arith.constant 0 : index
    %c0_9 = arith.constant 0 : index
    %15 = vector.load %arg4[%c0_8, %c0_9] : memref<2x128xf32, #tpu.memory_space<vmem>>, vector<2x128xf32>
    tpu.vector_store %arg4[%c0_8, %c0_9], %14 {strides = array<i32>} : memref<2x128xf32, #tpu.memory_space<vmem>>, vector<2x128xf32>,
    %cst_10 = arith.constant dense<0.000000e+00> : vector<2x128xf32>
    %16 = vector.multi_reduction <add>, %7, %cst_10 [1] : vector<2x128x128xf32> to vector<2x128xf32>
    %c0_i32 = arith.constant 0 : i32
    %17 = arith.cmpi eq, %arg0, %c0_i32 : i32
    %18 = arith.extui %17 : i1 to i32
    %c0_i32_11 = arith.constant 0 : i32
    %19 = arith.cmpi ne, %18, %c0_i32_11 : i32
    scf.if %19 {
      %cst_17 = arith.constant 0.000000e+00 : f32
      %26 = vector.broadcast %cst_17 : f32 to vector<2x128xf32>
      %c0_18 = arith.constant 0 : index
      %c0_19 = arith.constant 0 : index
      %27 = vector.load %arg5[%c0_18, %c0_19] : memref<2x128xf32, #tpu.memory_space<vmem>>, vector<2x128xf32>
      tpu.vector_store %arg5[%c0_18, %c0_19], %26 {strides = array<i32>} : memref<2x128xf32, #tpu.memory_space<vmem>>, vector<2x128xf32>,
    } else {
    }
    %c0_12 = arith.constant 0 : index
    %c0_13 = arith.constant 0 : index
    %20 = vector.load %arg5[%c0_12, %c0_13] : memref<2x128xf32, #tpu.memory_space<vmem>>, vector<2x128xf32>
    %21 = arith.addf %20, %16 : vector<2x128xf32>
    %c0_14 = arith.constant 0 : index
    %c0_15 = arith.constant 0 : index
    %22 = vector.load %arg5[%c0_14, %c0_15] : memref<2x128xf32, #tpu.memory_space<vmem>>, vector<2x128xf32>
    tpu.vector_store %arg5[%c0_14, %c0_15], %21 {strides = array<i32>} : memref<2x128xf32, #tpu.memory_space<vmem>>, vector<2x128xf32>,
    %c1_i32 = arith.constant 1 : i32
    %23 = arith.cmpi eq, %arg0, %c1_i32 : i32
    %24 = arith.extui %23 : i1 to i32
    %c0_i32_16 = arith.constant 0 : i32
    %25 = arith.cmpi ne, %24, %c0_i32_16 : i32
    scf.if %25 {
      %c0_17 = arith.constant 0 : index
      %c0_18 = arith.constant 0 : index
      %26 = vector.load %arg5[%c0_17, %c0_18] : memref<2x128xf32, #tpu.memory_space<vmem>>, vector<2x128xf32>
      %cst_19 = arith.constant 3.906250e-03 : f32
      %27 = vector.broadcast %cst_19 : f32 to vector<2x128xf32>
      %28 = arith.mulf %26, %27 : vector<2x128xf32>
      %c0_20 = arith.constant 0 : index
      %c0_21 = arith.constant 0 : index
      %29 = vector.load %arg5[%c0_20, %c0_21] : memref<2x128xf32, #tpu.memory_space<vmem>>, vector<2x128xf32>
      tpu.vector_store %arg5[%c0_20, %c0_21], %28 {strides = array<i32>} : memref<2x128xf32, #tpu.memory_space<vmem>>, vector<2x128xf32>,
    } else {
    }
    return
  }
  func.func @transform_0(%arg0: i32) -> (i32, i32, i32) {
    %c0_i32 = arith.constant 0 : i32
    %c0_i32_0 = arith.constant 0 : i32
    %c0_i32_1 = arith.constant 0 : i32
    return %c0_i32, %arg0, %c0_i32_0 : i32, i32, i32
  }
  func.func @transform_1(%arg0: i32) -> (i32, i32) {
    %c0_i32 = arith.constant 0 : i32
    %c0_i32_0 = arith.constant 0 : i32
    %c0_i32_1 = arith.constant 0 : i32
    return %c0_i32, %c0_i32_0 : i32, i32
  }
  func.func @transform_2(%arg0: i32) -> (i32, i32) {
    %c0_i32 = arith.constant 0 : i32
    %c0_i32_0 = arith.constant 0 : i32
    %c0_i32_1 = arith.constant 0 : i32
    return %c0_i32, %c0_i32_0 : i32, i32
  }
  func.func @transform_3(%arg0: i32) -> (i32, i32) {
    %c0_i32 = arith.constant 0 : i32
    %c0_i32_0 = arith.constant 0 : i32
    return %c0_i32, %arg0 : i32, i32
  }
  func.func @transform_4(%arg0: i32) -> (i32, i32) {
    %c0_i32 = arith.constant 0 : i32
    %c0_i32_0 = arith.constant 0 : i32
    %c0_i32_1 = arith.constant 0 : i32
    return %c0_i32, %c0_i32_0 : i32, i32
  }
}

</mosaic_0001>

<llo_original>
// kernel: tpu_custom_call.1
$region0: #{tpu_custom_call.1}
  #allocation0 [shape = 'u32[]', space=smem, size = 0x4, offset = 0x4, fixed_abs, tag = 'smem constant byte address 0x4 - core index']
  #allocation1 [shape = 'u32[144,128]{1,0:T(1,128)}', space=vmem, size = 0x12000, scoped, tag = 'internal scratch']
  %s0 = inlined_call_operand.vmem [shape: f32[2,256,16], index: 0, kind: input, shape index: {}]
  %s1 = inlined_call_operand.vmem [shape: f32[16,128], index: 1, kind: input, shape index: {}]
  %s2 = inlined_call_operand.vmem [shape: f32[1,128], index: 2, kind: input, shape index: {}]
  %s3 = inlined_call_operand.hbm [shape: f32[2,256], index: 3, kind: output, shape index: {0}]
  %s4 = inlined_call_operand.hbm [shape: f32[2,128], index: 4, kind: output, shape index: {1}]
  %5 = xla_tuple %s3, %s4
  %s6 = sld [smem:[#allocation0]]
  $region99: #{tpu_custom_call.1} parent=0
    _
  %s8 = ssub.s32 1, %s6
  %s9 = scalar_select 0, %s8, %s6
  $region1: #{tpu_custom_call.1} parent=0
    #allocation2 [shape = 'u8[262144]{0}', space=vmem, size = 0x40000, scoped, tag = 'input window, operand 0']
    #allocation3 [shape = 'u8[2048]{0}', space=vmem, size = 0x800, scoped, tag = 'output window, operand 0']
    #allocation4 [shape = 's32[2]{0}', space=sflag, size = 0x8, scoped, tag = 'scoped memory for tpu_custom_call.1']
    #allocation5 [shape = 'u8[1024]{0}', space=vmem, size = 0x400, scoped, tag = 'output window, operand 1, single buffered']
    #allocation6 [shape = 's32[1]{0}', space=sflag, size = 0x4, scoped, tag = 'scoped memory for tpu_custom_call.1']
    %10 = vsyncpa [#allocation4], 0
    %s11 = scalar_lea.sflag [#allocation4], 1
    %12 = vsyncpa %s11, 0
    %13 = vsyncpa [#allocation6], 0
    loop: start=0, step=1, limit=4
    $region2: #{tpu_custom_call.1} parent=1 // loop_pre_header
      _
    $region3: #{tpu_custom_call.1} parent=1 // loop_header
      %s15 = sphi 0, %s19
      %p16 = scmp.ge.s32.totalorder %s15, 4
      %s25 = sphi 0, %s27
      %s28 = sphi 0, %s25
      %s29 = sphi 0, %s28
      %s45 = sphi 0, %s29
      %s49 = sphi 0, %s49
      %s51 = sphi 0, %s49
      %s52 = sphi 0, %s51
      %s66 = sphi 0, %s52
      %s70 = sphi 0, %s70
      %s72 = sphi 0, %s70
      %s73 = sphi 0, %s72
      %s87 = sphi 0, %s73
      %s93 = sphi 0, %s95
      %s96 = sphi 0, %s93
      %s97 = sphi 0, %s96
      %s113 = sphi 0, %s97
      %s117 = sphi 0, %s117
      %s119 = sphi 0, %s117
      %s120 = sphi 0, %s119
      %s134 = sphi 0, %s120
    $region4: #{tpu_custom_call.1} parent=1 // loop_header_branch
      %18 = sbr.rel (%p16) target = $region8
    $region5: #{tpu_custom_call.1} parent=1 // loop_body
      %s20 = ssub.s32 %s15, 1
      %s21 = ssub.s32 %s15, 2
      %s22 = sadd.s32 %s15, 1
      %s23 = ssub.s32 %s15, %s22
      %p24 = scmp.eq.s32.totalorder %s23, 0
      %s26 = sadd.s32 %s25, 1
      %s27 = scalar_select %p24, %s25, %s26
      %p30 = pneg %p24
      %p31 = scmp.eq.s32.totalorder %s15, 1
      %p32 = por %p30, %p31
      %p33 = scmp.ne.s32.totalorder %s25, %s28
      %p34 = scmp.eq.s32.totalorder %s15, 0
      %p35 = por %p33, %p34
      %p36 = scmp.ne.s32.totalorder %s25, %s28
      %p37 = scmp.eq.s32.totalorder %s20, 1
      %p38 = por %p36, %p37
      %p39 = scmp.ne.s32.totalorder %s28, %s29
      %p40 = scmp.eq.s32.totalorder %s20, 0
      %p41 = por %p39, %p40
      %p42 = scmp.ne.s32.totalorder %s28, %s29
      %p43 = scmp.eq.s32.totalorder %s21, 1
      %p44 = por %p42, %p43
      %p46 = scmp.ne.s32.totalorder %s29, %s45
      %p47 = scmp.eq.s32.totalorder %s21, 0
      %p48 = por %p46, %p47
      %s50 = sadd.s32 %s49, 1
      %p53 = scmp.eq.s32.totalorder %s15, 1
      %p54 = scmp.ne.s32.totalorder %s49, %s51
      %p55 = scmp.eq.s32.totalorder %s15, 0
      %p56 = por %p54, %p55
      %p57 = scmp.ne.s32.totalorder %s49, %s51
      %p58 = scmp.eq.s32.totalorder %s20, 1
      %p59 = por %p57, %p58
      %p60 = scmp.ne.s32.totalorder %s51, %s52
      %p61 = scmp.eq.s32.totalorder %s20, 0
      %p62 = por %p60, %p61
      %p63 = scmp.ne.s32.totalorder %s51, %s52
      %p64 = scmp.eq.s32.totalorder %s21, 1
      %p65 = por %p63, %p64
      %p67 = scmp.ne.s32.totalorder %s52, %s66
      %p68 = scmp.eq.s32.totalorder %s21, 0
      %p69 = por %p67, %p68
      %s71 = sadd.s32 %s70, 1
      %p74 = scmp.eq.s32.totalorder %s15, 1
      %p75 = scmp.ne.s32.totalorder %s70, %s72
      %p76 = scmp.eq.s32.totalorder %s15, 0
      %p77 = por %p75, %p76
      %p78 = scmp.ne.s32.totalorder %s70, %s72
      %p79 = scmp.eq.s32.totalorder %s20, 1
      %p80 = por %p78, %p79
      %p81 = scmp.ne.s32.totalorder %s72, %s73
      %p82 = scmp.eq.s32.totalorder %s20, 0
      %p83 = por %p81, %p82
      %p84 = scmp.ne.s32.totalorder %s72, %s73
      %p85 = scmp.eq.s32.totalorder %s21, 1
      %p86 = por %p84, %p85
      %p88 = scmp.ne.s32.totalorder %s73, %s87
      %p89 = scmp.eq.s32.totalorder %s21, 0
      %p90 = por %p88, %p89
      %s91 = ssub.s32 %s15, %s22
      %p92 = scmp.eq.s32.totalorder %s91, 0
      %s94 = sadd.s32 %s93, 1
      %s95 = scalar_select %p92, %s93, %s94
      %p98 = pneg %p92
      %p99 = scmp.eq.s32.totalorder %s15, 1
      %p100 = por %p98, %p99
      %p101 = scmp.ne.s32.totalorder %s93, %s96
      %p102 = scmp.eq.s32.totalorder %s15, 0
      %p103 = por %p101, %p102
      %p104 = scmp.ne.s32.totalorder %s93, %s96
      %p105 = scmp.eq.s32.totalorder %s20, 1
      %p106 = por %p104, %p105
      %p107 = scmp.ne.s32.totalorder %s96, %s97
      %p108 = scmp.eq.s32.totalorder %s20, 0
      %p109 = por %p107, %p108
      %p110 = scmp.ne.s32.totalorder %s96, %s97
      %p111 = scmp.eq.s32.totalorder %s21, 1
      %p112 = por %p110, %p111
      %p114 = scmp.ne.s32.totalorder %s97, %s113
      %p115 = scmp.eq.s32.totalorder %s21, 0
      %p116 = por %p114, %p115
      %s118 = sadd.s32 %s117, 1
      %p121 = scmp.eq.s32.totalorder %s15, 1
      %p122 = scmp.ne.s32.totalorder %s117, %s119
      %p123 = scmp.eq.s32.totalorder %s15, 0
      %p124 = por %p122, %p123
      %p125 = scmp.ne.s32.totalorder %s117, %s119
      %p126 = scmp.eq.s32.totalorder %s20, 1
      %p127 = por %p125, %p126
      %p128 = scmp.ne.s32.totalorder %s119, %s120
      %p129 = scmp.eq.s32.totalorder %s20, 0
      %p130 = por %p128, %p129
      %p131 = scmp.ne.s32.totalorder %s119, %s120
      %p132 = scmp.eq.s32.totalorder %s21, 1
      %p133 = por %p131, %p132
      %p135 = scmp.ne.s32.totalorder %s120, %s134
      %p136 = scmp.eq.s32.totalorder %s21, 0
      %p137 = por %p135, %p136
      %p138 = scmp.le.s32.totalorder 1, %s15
      %p139 = scmp.lt.s32.totalorder %s15, 3
      %p140 = pnand %p138, %p139
      %p141 = pneg %p140
      // Predicated region
      $region9: #{tpu_custom_call.1} parent=5 // pred_check
        _
      $region10: #{tpu_custom_call.1} parent=5 // pred_check_branch
        %143 = sbr.rel (%p140) target = $region12
      $region11: #{tpu_custom_call.1} parent=5 // pred_region
        %s144 = ssub.s32 %s15, 1
        // Predicated region
        $region13: #{tpu_custom_call.1} parent=11 // pred_check
          %p145 = pneg %p62
        $region14: #{tpu_custom_call.1} parent=11 // pred_check_branch
          %147 = sbr.rel (%p145) target = $region16
        $region15: #{tpu_custom_call.1} parent=11 // pred_region
          _
        $region16: #{tpu_custom_call.1} parent=11 // pred_fallthru
          _
        // Predicated region
        $region17: #{tpu_custom_call.1} parent=11 // pred_check
          %p148 = pneg %p83
        $region18: #{tpu_custom_call.1} parent=11 // pred_check_branch
          %150 = sbr.rel (%p148) target = $region20
        $region19: #{tpu_custom_call.1} parent=11 // pred_region
          _
        $region20: #{tpu_custom_call.1} parent=11 // pred_fallthru
          _
      $region12: #{tpu_custom_call.1} parent=5 // pred_fallthru
        _
      %p151 = scmp.lt.s32.totalorder %s15, 2
      // Predicated region
      $region21: #{tpu_custom_call.1} parent=5 // pred_check
        %p152 = pneg %p151
      $region22: #{tpu_custom_call.1} parent=5 // pred_check_branch
        %154 = sbr.rel (%p152) target = $region24
      $region23: #{tpu_custom_call.1} parent=5 // pred_region
        // Predicated region
        $region25: #{tpu_custom_call.1} parent=23 // pred_check
          %p155 = pneg %p35
        $region26: #{tpu_custom_call.1} parent=23 // pred_check_branch
          %157 = sbr.rel (%p155) target = $region28
        $region27: #{tpu_custom_call.1} parent=23 // pred_region
          %s158 = sand.u32 %s25, 1
          %s159 = sand.u32 %s25, 1
          %s160 = smul.addr %s159, 256
          %s161 = scalar_lea.vmem [#allocation2], %s160
          %s162 = smul.u32 16, %s15
          %s163 = smul.addr %s162, 8
          %s164 = scalar_lea.vmem %s0, %s163
          // Predicated region
          $region29: #{tpu_custom_call.1} parent=27 // pred_check
            _
          $region30: #{tpu_custom_call.1} parent=27 // pred_check_branch
            %166 = sbr.rel (0) target = $region32
          $region31: #{tpu_custom_call.1} parent=27 // pred_region
            // Predicated region
            $region33: #{tpu_custom_call.1} parent=31 // pred_check
              _
            $region34: #{tpu_custom_call.1} parent=31 // pred_check_branch
              %168 = sbr.rel (0) target = $region36
            $region35: #{tpu_custom_call.1} parent=31 // pred_region
              // Predicated region
              $region48: #{tpu_custom_call.1} parent=35 // pred_check
                _
              $region49: #{tpu_custom_call.1} parent=35 // pred_check_branch
                %246 = sbr.rel (0) target = $region51
              $region50: #{tpu_custom_call.1} parent=35 // pred_region
                loop: start=0, step=1, limit=1
                $region52: #{tpu_custom_call.1} parent=50 // loop_pre_header
                  _
                $region53: #{tpu_custom_call.1} parent=50 // loop_header
                  %s248 = sphi 0, %s252
                  %p249 = scmp.ge.s32.totalorder %s248, 1
                  %s253 = sphi %s164, %s164
                  %s254 = sphi %s161, %s161
                $region54: #{tpu_custom_call.1} parent=50 // loop_header_branch
                  %251 = sbr.rel (%p249) target = $region58
                $region55: #{tpu_custom_call.1} parent=50 // loop_body
                  %v255 = vld [vmem:[%s253] sm:$0xff]
                  %256 = vst [vmem:[%s254] sm:$0xff] %v255
                  %v257 = vld [vmem:[%s253 + $0x8] sm:$0xff]
                  %258 = vst [vmem:[%s254 + $0x8] sm:$0xff] %v257
                  %v259 = vld [vmem:[%s253 + $0x10] sm:$0xff]
                  %260 = vst [vmem:[%s254 + $0x10] sm:$0xff] %v259
                  %v261 = vld [vmem:[%s253 + $0x18] sm:$0xff]
                  %262 = vst [vmem:[%s254 + $0x18] sm:$0xff] %v261
                  %v263 = vld [vmem:[%s253 + $0x20] sm:$0xff]
                  %264 = vst [vmem:[%s254 + $0x20] sm:$0xff] %v263
                  %v265 = vld [vmem:[%s253 + $0x28] sm:$0xff]
                  %266 = vst [vmem:[%s254 + $0x28] sm:$0xff] %v265
                  %v267 = vld [vmem:[%s253 + $0x30] sm:$0xff]
                  %268 = vst [vmem:[%s254 + $0x30] sm:$0xff] %v267
                  %v269 = vld [vmem:[%s253 + $0x38] sm:$0xff]
                  %270 = vst [vmem:[%s254 + $0x38] sm:$0xff] %v269
                  %v271 = vld [vmem:[%s253 + $0x40] sm:$0xff]
                  %272 = vst [vmem:[%s254 + $0x40] sm:$0xff] %v271
                  %v273 = vld [vmem:[%s253 + $0x48] sm:$0xff]
                  %274 = vst [vmem:[%s254 + $0x48] sm:$0xff] %v273
                  %v275 = vld [vmem:[%s253 + $0x50] sm:$0xff]
                  %276 = vst [vmem:[%s254 + $0x50] sm:$0xff] %v275
                  %v277 = vld [vmem:[%s253 + $0x58] sm:$0xff]
                  %278 = vst [vmem:[%s254 + $0x58] sm:$0xff] %v277
                  %v279 = vld [vmem:[%s253 + $0x60] sm:$0xff]
                  %280 = vst [vmem:[%s254 + $0x60] sm:$0xff] %v279
                  %v281 = vld [vmem:[%s253 + $0x68] sm:$0xff]
                  %282 = vst [vmem:[%s254 + $0x68] sm:$0xff] %v281
                  %v283 = vld [vmem:[%s253 + $0x70] sm:$0xff]
                  %284 = vst [vmem:[%s254 + $0x70] sm:$0xff] %v283
                  %v285 = vld [vmem:[%s253 + $0x78] sm:$0xff]
                  %286 = vst [vmem:[%s254 + $0x78] sm:$0xff] %v285
                  %v287 = vld [vmem:[%s253 + $0x100] sm:$0xff]
                  %288 = vst [vmem:[%s254 + $0x80] sm:$0xff] %v287
                  %v289 = vld [vmem:[%s253 + $0x108] sm:$0xff]
                  %290 = vst [vmem:[%s254 + $0x88] sm:$0xff] %v289
                  %v291 = vld [vmem:[%s253 + $0x110] sm:$0xff]
                  %292 = vst [vmem:[%s254 + $0x90] sm:$0xff] %v291
                  %v293 = vld [vmem:[%s253 + $0x118] sm:$0xff]
                  %294 = vst [vmem:[%s254 + $0x98] sm:$0xff] %v293
                  %v295 = vld [vmem:[%s253 + $0x120] sm:$0xff]
                  %296 = vst [vmem:[%s254 + $0xa0] sm:$0xff] %v295
                  %v297 = vld [vmem:[%s253 + $0x128] sm:$0xff]
                  %298 = vst [vmem:[%s254 + $0xa8] sm:$0xff] %v297
                  %v299 = vld [vmem:[%s253 + $0x130] sm:$0xff]
                  %300 = vst [vmem:[%s254 + $0xb0] sm:$0xff] %v299
                  %v301 = vld [vmem:[%s253 + $0x138] sm:$0xff]
                  %302 = vst [vmem:[%s254 + $0xb8] sm:$0xff] %v301
                  %v303 = vld [vmem:[%s253 + $0x140] sm:$0xff]
                  %304 = vst [vmem:[%s254 + $0xc0] sm:$0xff] %v303
                  %v305 = vld [vmem:[%s253 + $0x148] sm:$0xff]
                  %306 = vst [vmem:[%s254 + $0xc8] sm:$0xff] %v305
                  %v307 = vld [vmem:[%s253 + $0x150] sm:$0xff]
                  %308 = vst [vmem:[%s254 + $0xd0] sm:$0xff] %v307
                  %v309 = vld [vmem:[%s253 + $0x158] sm:$0xff]
                  %310 = vst [vmem:[%s254 + $0xd8] sm:$0xff] %v309
                  %v311 = vld [vmem:[%s253 + $0x160] sm:$0xff]
                  %312 = vst [vmem:[%s254 + $0xe0] sm:$0xff] %v311
                  %v313 = vld [vmem:[%s253 + $0x168] sm:$0xff]
                  %314 = vst [vmem:[%s254 + $0xe8] sm:$0xff] %v313
                  %v315 = vld [vmem:[%s253 + $0x170] sm:$0xff]
                  %316 = vst [vmem:[%s254 + $0xf0] sm:$0xff] %v315
                  %v317 = vld [vmem:[%s253 + $0x178] sm:$0xff]
                  %318 = vst [vmem:[%s254 + $0xf8] sm:$0xff] %v317
                $region56: #{tpu_custom_call.1} parent=50 // loop_footer
                  %s252 = sadd.s32 1, %s248
                $region57: #{tpu_custom_call.1} parent=50 // loop_footer_branch
                  %247 = sbr.rel target = $region53
                $region58: #{tpu_custom_call.1} parent=50 // loop_exit
                  _
              $region51: #{tpu_custom_call.1} parent=35 // pred_fallthru
                _
              // Predicated region
              $region59: #{tpu_custom_call.1} parent=35 // pred_check
                _
              $region60: #{tpu_custom_call.1} parent=35 // pred_check_branch
                %320 = sbr.rel target = $region62
              $region61: #{tpu_custom_call.1} parent=35 // pred_region
                _
              $region62: #{tpu_custom_call.1} parent=35 // pred_fallthru
                _
            $region36: #{tpu_custom_call.1} parent=31 // pred_fallthru
              _
            // Predicated region
            $region37: #{tpu_custom_call.1} parent=31 // pred_check
              _
            $region38: #{tpu_custom_call.1} parent=31 // pred_check_branch
              %170 = sbr.rel target = $region40
            $region39: #{tpu_custom_call.1} parent=31 // pred_region
              %s172 = ssub.s32 256, 1
              loop: start=0, step=1, limit=1
              $region41: #{tpu_custom_call.1} parent=39 // loop_pre_header
                _
              $region42: #{tpu_custom_call.1} parent=39 // loop_header
                %s174 = sphi 0, %s178
                %p175 = scmp.ge.s32.totalorder %s174, 1
                %s179 = sphi %s164, %s164
                %s180 = sphi %s161, %s161
              $region43: #{tpu_custom_call.1} parent=39 // loop_header_branch
                %177 = sbr.rel (%p175) target = $region47
              $region44: #{tpu_custom_call.1} parent=39 // loop_body
                %v181 = vld [vmem:[%s179] sm:%s172]
                %182 = vst [vmem:[%s180] sm:%s172] %v181
                %v183 = vld [vmem:[%s179 + $0x8] sm:%s172]
                %184 = vst [vmem:[%s180 + $0x8] sm:%s172] %v183
                %v185 = vld [vmem:[%s179 + $0x10] sm:%s172]
                %186 = vst [vmem:[%s180 + $0x10] sm:%s172] %v185
                %v187 = vld [vmem:[%s179 + $0x18] sm:%s172]
                %188 = vst [vmem:[%s180 + $0x18] sm:%s172] %v187
                %v189 = vld [vmem:[%s179 + $0x20] sm:%s172]
                %190 = vst [vmem:[%s180 + $0x20] sm:%s172] %v189
                %v191 = vld [vmem:[%s179 + $0x28] sm:%s172]
                %192 = vst [vmem:[%s180 + $0x28] sm:%s172] %v191
                %v193 = vld [vmem:[%s179 + $0x30] sm:%s172]
                %194 = vst [vmem:[%s180 + $0x30] sm:%s172] %v193
                %v195 = vld [vmem:[%s179 + $0x38] sm:%s172]
                %196 = vst [vmem:[%s180 + $0x38] sm:%s172] %v195
                %v197 = vld [vmem:[%s179 + $0x40] sm:%s172]
                %198 = vst [vmem:[%s180 + $0x40] sm:%s172] %v197
                %v199 = vld [vmem:[%s179 + $0x48] sm:%s172]
                %200 = vst [vmem:[%s180 + $0x48] sm:%s172] %v199
                %v201 = vld [vmem:[%s179 + $0x50] sm:%s172]
                %202 = vst [vmem:[%s180 + $0x50] sm:%s172] %v201
                %v203 = vld [vmem:[%s179 + $0x58] sm:%s172]
                %204 = vst [vmem:[%s180 + $0x58] sm:%s172] %v203
                %v205 = vld [vmem:[%s179 + $0x60] sm:%s172]
                %206 = vst [vmem:[%s180 + $0x60] sm:%s172] %v205
                %v207 = vld [vmem:[%s179 + $0x68] sm:%s172]
                %208 = vst [vmem:[%s180 + $0x68] sm:%s172] %v207
                %v209 = vld [vmem:[%s179 + $0x70] sm:%s172]
                %210 = vst [vmem:[%s180 + $0x70] sm:%s172] %v209
                %v211 = vld [vmem:[%s179 + $0x78] sm:%s172]
                %212 = vst [vmem:[%s180 + $0x78] sm:%s172] %v211
                %v213 = vld [vmem:[%s179 + $0x100] sm:%s172]
                %214 = vst [vmem:[%s180 + $0x80] sm:%s172] %v213
                %v215 = vld [vmem:[%s179 + $0x108] sm:%s172]
                %216 = vst [vmem:[%s180 + $0x88] sm:%s172] %v215
                %v217 = vld [vmem:[%s179 + $0x110] sm:%s172]
                %218 = vst [vmem:[%s180 + $0x90] sm:%s172] %v217
                %v219 = vld [vmem:[%s179 + $0x118] sm:%s172]
                %220 = vst [vmem:[%s180 + $0x98] sm:%s172] %v219
                %v221 = vld [vmem:[%s179 + $0x120] sm:%s172]
                %222 = vst [vmem:[%s180 + $0xa0] sm:%s172] %v221
                %v223 = vld [vmem:[%s179 + $0x128] sm:%s172]
                %224 = vst [vmem:[%s180 + $0xa8] sm:%s172] %v223
                %v225 = vld [vmem:[%s179 + $0x130] sm:%s172]
                %226 = vst [vmem:[%s180 + $0xb0] sm:%s172] %v225
                %v227 = vld [vmem:[%s179 + $0x138] sm:%s172]
                %228 = vst [vmem:[%s180 + $0xb8] sm:%s172] %v227
                %v229 = vld [vmem:[%s179 + $0x140] sm:%s172]
                %230 = vst [vmem:[%s180 + $0xc0] sm:%s172] %v229
                %v231 = vld [vmem:[%s179 + $0x148] sm:%s172]
                %232 = vst [vmem:[%s180 + $0xc8] sm:%s172] %v231
                %v233 = vld [vmem:[%s179 + $0x150] sm:%s172]
                %234 = vst [vmem:[%s180 + $0xd0] sm:%s172] %v233
                %v235 = vld [vmem:[%s179 + $0x158] sm:%s172]
                %236 = vst [vmem:[%s180 + $0xd8] sm:%s172] %v235
                %v237 = vld [vmem:[%s179 + $0x160] sm:%s172]
                %238 = vst [vmem:[%s180 + $0xe0] sm:%s172] %v237
                %v239 = vld [vmem:[%s179 + $0x168] sm:%s172]
                %240 = vst [vmem:[%s180 + $0xe8] sm:%s172] %v239
                %v241 = vld [vmem:[%s179 + $0x170] sm:%s172]
                %242 = vst [vmem:[%s180 + $0xf0] sm:%s172] %v241
                %v243 = vld [vmem:[%s179 + $0x178] sm:%s172]
                %244 = vst [vmem:[%s180 + $0xf8] sm:%s172] %v243
              $region45: #{tpu_custom_call.1} parent=39 // loop_footer
                %s178 = sadd.s32 1, %s174
              $region46: #{tpu_custom_call.1} parent=39 // loop_footer_branch
                %173 = sbr.rel target = $region42
              $region47: #{tpu_custom_call.1} parent=39 // loop_exit
                _
            $region40: #{tpu_custom_call.1} parent=31 // pred_fallthru
              _
          $region32: #{tpu_custom_call.1} parent=27 // pred_fallthru
            _
          %321 = vnop
        $region28: #{tpu_custom_call.1} parent=23 // pred_fallthru
          _
      $region24: #{tpu_custom_call.1} parent=5 // pred_fallthru
        _
      %p322 = scmp.le.s32.totalorder 1, %s15
      %p323 = scmp.lt.s32.totalorder %s15, 3
      %p324 = pnand %p322, %p323
      %p325 = pneg %p324
      // Predicated region
      $region63: #{tpu_custom_call.1} parent=5 // pred_check
        _
      $region64: #{tpu_custom_call.1} parent=5 // pred_check_branch
        %327 = sbr.rel (%p324) target = $region66
      $region65: #{tpu_custom_call.1} parent=5 // pred_region
        %s328 = ssub.s32 %s15, 1
        %s329 = sand.u32 %s28, 1
        %s330 = sand.u32 %s28, 1
        %s331 = smul.addr %s330, 256
        %s332 = scalar_lea.vmem [#allocation2], %s331
        // Predicated region
        $region67: #{tpu_custom_call.1} parent=65 // pred_check
          %p333 = pneg %p41
        $region68: #{tpu_custom_call.1} parent=65 // pred_check_branch
          %335 = sbr.rel (%p333) target = $region70
        $region69: #{tpu_custom_call.1} parent=65 // pred_region
          _
        $region70: #{tpu_custom_call.1} parent=65 // pred_fallthru
          _
        %s336 = sand.u32 %s28, 1
        %s337 = sand.u32 %s28, 1
        %s338 = smul.addr %s337, 256
        %s339 = scalar_lea.vmem [#allocation2], %s338
        %p340 = pneg %p41
        %p341 = pneg %p38
        %p342 = pneg %p62
        %p343 = pneg %p59
        %p344 = pneg %p83
        %p345 = pneg %p80
        %p346 = pneg %p109
        %p347 = pneg %p106
        %s348 = sand.u32 %s96, 1
        %s349 = scalar_lea.sflag [#allocation4], %s348
        %s350 = sand.u32 %s96, 1
        %s351 = smul.addr %s350, 2
        %s352 = scalar_lea.vmem [#allocation3], %s351
        %p353 = pneg %p130
        %p354 = pneg %p127
        %s355 = smul.u32 16, %s20
        %v356 = vld [vmem:[%s332] sm:$0xff]
        %v357 = vld [vmem:[%s332 + $0x8] sm:$0xff]
        %v358 = vld [vmem:[%s332 + $0x10] sm:$0xff]
        %v359 = vld [vmem:[%s332 + $0x18] sm:$0xff]
        %v360 = vld [vmem:[%s332 + $0x20] sm:$0xff]
        %v361 = vld [vmem:[%s332 + $0x28] sm:$0xff]
        %v362 = vld [vmem:[%s332 + $0x30] sm:$0xff]
        %v363 = vld [vmem:[%s332 + $0x38] sm:$0xff]
        %v364 = vld [vmem:[%s332 + $0x40] sm:$0xff]
        %v365 = vld [vmem:[%s332 + $0x48] sm:$0xff]
        %v366 = vld [vmem:[%s332 + $0x50] sm:$0xff]
        %v367 = vld [vmem:[%s332 + $0x58] sm:$0xff]
        %v368 = vld [vmem:[%s332 + $0x60] sm:$0xff]
        %v369 = vld [vmem:[%s332 + $0x68] sm:$0xff]
        %v370 = vld [vmem:[%s332 + $0x70] sm:$0xff]
        %v371 = vld [vmem:[%s332 + $0x78] sm:$0xff]
        %v372 = vld [vmem:[%s332 + $0x80] sm:$0xff]
        %v373 = vld [vmem:[%s332 + $0x88] sm:$0xff]
        %v374 = vld [vmem:[%s332 + $0x90] sm:$0xff]
        %v375 = vld [vmem:[%s332 + $0x98] sm:$0xff]
        %v376 = vld [vmem:[%s332 + $0xa0] sm:$0xff]
        %v377 = vld [vmem:[%s332 + $0xa8] sm:$0xff]
        %v378 = vld [vmem:[%s332 + $0xb0] sm:$0xff]
        %v379 = vld [vmem:[%s332 + $0xb8] sm:$0xff]
        %v380 = vld [vmem:[%s332 + $0xc0] sm:$0xff]
        %v381 = vld [vmem:[%s332 + $0xc8] sm:$0xff]
        %v382 = vld [vmem:[%s332 + $0xd0] sm:$0xff]
        %v383 = vld [vmem:[%s332 + $0xd8] sm:$0xff]
        %v384 = vld [vmem:[%s332 + $0xe0] sm:$0xff]
        %v385 = vld [vmem:[%s332 + $0xe8] sm:$0xff]
        %v386 = vld [vmem:[%s332 + $0xf0] sm:$0xff]
        %v387 = vld [vmem:[%s332 + $0xf8] sm:$0xff]
        %v388 = vld [vmem:[%s1] sm:$0xff]
        %v389 = vld [vmem:[%s1 + $0x8] sm:$0xff]
        %v390 = vld [vmem:[%s2] sm:$0x1]
        %v392 = vlaneseq
        %v393 = vshrl.u32 %v392, 7
        %v394 = vsub.s32 0, %v393
        %v395 = vrot.slane %v390, %v394
        %vm397 = vcmask 130048
        %v399 = vsel %vm397, %v356, 0
        %v402 = vsel %vm397, %v357, 0
        %v405 = vsel %vm397, %v358, 0
        %v408 = vsel %vm397, %v359, 0
        %v411 = vsel %vm397, %v360, 0
        %v414 = vsel %vm397, %v361, 0
        %v417 = vsel %vm397, %v362, 0
        %v420 = vsel %vm397, %v363, 0
        %v423 = vsel %vm397, %v364, 0
        %v426 = vsel %vm397, %v365, 0
        %v429 = vsel %vm397, %v366, 0
        %v432 = vsel %vm397, %v367, 0
        %v435 = vsel %vm397, %v368, 0
        %v438 = vsel %vm397, %v369, 0
        %v441 = vsel %vm397, %v370, 0
        %v444 = vsel %vm397, %v371, 0
        %v447 = vsel %vm397, %v372, 0
        %v450 = vsel %vm397, %v373, 0
        %v453 = vsel %vm397, %v374, 0
        %v456 = vsel %vm397, %v375, 0
        %v459 = vsel %vm397, %v376, 0
        %v462 = vsel %vm397, %v377, 0
        %v465 = vsel %vm397, %v378, 0
        %v468 = vsel %vm397, %v379, 0
        %v471 = vsel %vm397, %v380, 0
        %v474 = vsel %vm397, %v381, 0
        %v477 = vsel %vm397, %v382, 0
        %v480 = vsel %vm397, %v383, 0
        %v483 = vsel %vm397, %v384, 0
        %v486 = vsel %vm397, %v385, 0
        %v489 = vsel %vm397, %v386, 0
        %v492 = vsel %vm397, %v387, 0
        %494 = vmatprep.subr.mxu0 0.0
        %495 = vmatpush1.msra.mxu0 0.0
        %496 = vmatprep.subr.mxu0 0.0
        %497 = vmatpush1.msra.mxu0 0.0
        %498 = vmatprep.subr.mxu0 0.0
        %499 = vmatpush1.msra.mxu0 0.0
        %500 = vmatprep.subr.mxu0 0.0
        %501 = vmatpush1.msra.mxu0 0.0
        %502 = vmatprep.subr.mxu0 0.0
        %503 = vmatpush1.msra.mxu0 0.0
        %504 = vmatprep.subr.mxu0 0.0
        %505 = vmatpush1.msra.mxu0 0.0
        %506 = vmatprep.subr.mxu0 0.0
        %507 = vmatpush1.msra.mxu0 0.0
        %508 = vmatprep.subr.mxu0 0.0
        %509 = vmatpush1.msra.mxu0 0.0
        %510 = vmatprep.subr.mxu0 0.0
        %511 = vmatpush1.msra.mxu0 0.0
        %512 = vmatprep.subr.mxu0 0.0
        %513 = vmatpush1.msra.mxu0 0.0
        %514 = vmatprep.subr.mxu0 0.0
        %515 = vmatpush1.msra.mxu0 0.0
        %516 = vmatprep.subr.mxu0 0.0
        %517 = vmatpush1.msra.mxu0 0.0
        %518 = vmatprep.subr.mxu0 0.0
        %519 = vmatpush1.msra.mxu0 0.0
        %520 = vmatprep.subr.mxu0 0.0
        %521 = vmatpush1.msra.mxu0 0.0
        %522 = vmatprep.subr.mxu0 0.0
        %523 = vmatpush1.msra.mxu0 %v389
        %524 = vmatprep.subr.mxu0 0.0
        %525 = vmatpush1.msra.mxu0 %v388
        %526 = vmatprep.subr.mxu0 0.0
        %527 = vmatpush2.msra.mxu0 0.0
        %528 = vmatprep.subr.mxu0 0.0
        %529 = vmatpush2.msra.mxu0 0.0
        %530 = vmatprep.subr.mxu0 0.0
        %531 = vmatpush2.msra.mxu0 0.0
        %532 = vmatprep.subr.mxu0 0.0
        %533 = vmatpush2.msra.mxu0 0.0
        %534 = vmatprep.subr.mxu0 0.0
        %535 = vmatpush2.msra.mxu0 0.0
        %536 = vmatprep.subr.mxu0 0.0
        %537 = vmatpush2.msra.mxu0 0.0
        %538 = vmatprep.subr.mxu0 0.0
        %539 = vmatpush2.msra.mxu0 0.0
        %540 = vmatprep.subr.mxu0 0.0
        %541 = vmatpush2.msra.mxu0 0.0
        %542 = vmatprep.subr.mxu0 0.0
        %543 = vmatpush2.msra.mxu0 0.0
        %544 = vmatprep.subr.mxu0 0.0
        %545 = vmatpush2.msra.mxu0 0.0
        %546 = vmatprep.subr.mxu0 0.0
        %547 = vmatpush2.msra.mxu0 0.0
        %548 = vmatprep.subr.mxu0 0.0
        %549 = vmatpush2.msra.mxu0 0.0
        %550 = vmatprep.subr.mxu0 0.0
        %551 = vmatpush2.msra.mxu0 0.0
        %552 = vmatprep.subr.mxu0 0.0
        %553 = vmatpush2.msra.mxu0 0.0
        %554 = vmatprep.subr.mxu0 0.0
        %555 = vmatpush2.msra.mxu0 0.0
        %556 = vmatprep.subr.mxu0 0.0
        %557 = vmatpush2.msra.mxu0 0.0
        %558 = vmatprep.mubr.f32.mxu0 0.0
        %559 = vmatmul.mubr.f32.gmra.mxu0 %v399
        %v560 = vpop.f32.mrf.mxu0
        %v561 = vadd.f32 %v395, %v560
        %v562 = vpop.f32.mrf.mxu0
        %563 = vmatprep.mubr.f32.mxu0 0.0
        %564 = vmatmul.mubr.f32.gmra.mxu0 %v402
        %v565 = vpop.f32.mrf.mxu0
        %v566 = vadd.f32 %v395, %v565
        %v567 = vpop.f32.mrf.mxu0
        %568 = vmatprep.mubr.f32.mxu0 0.0
        %569 = vmatmul.mubr.f32.gmra.mxu0 %v405
        %v570 = vpop.f32.mrf.mxu0
        %v571 = vadd.f32 %v395, %v570
        %v572 = vpop.f32.mrf.mxu0
        %573 = vmatprep.mubr.f32.mxu0 0.0
        %574 = vmatmul.mubr.f32.gmra.mxu0 %v408
        %v575 = vpop.f32.mrf.mxu0
        %v576 = vadd.f32 %v395, %v575
        %v577 = vpop.f32.mrf.mxu0
        %578 = vmatprep.mubr.f32.mxu0 0.0
        %579 = vmatmul.mubr.f32.gmra.mxu0 %v411
        %v580 = vpop.f32.mrf.mxu0
        %v581 = vadd.f32 %v395, %v580
        %v582 = vpop.f32.mrf.mxu0
        %583 = vmatprep.mubr.f32.mxu0 0.0
        %584 = vmatmul.mubr.f32.gmra.mxu0 %v414
        %v585 = vpop.f32.mrf.mxu0
        %v586 = vadd.f32 %v395, %v585
        %v587 = vpop.f32.mrf.mxu0
        %588 = vmatprep.mubr.f32.mxu0 0.0
        %589 = vmatmul.mubr.f32.gmra.mxu0 %v417
        %v590 = vpop.f32.mrf.mxu0
        %v591 = vadd.f32 %v395, %v590
        %v592 = vpop.f32.mrf.mxu0
        %593 = vmatprep.mubr.f32.mxu0 0.0
        %594 = vmatmul.mubr.f32.gmra.mxu0 %v420
        %v595 = vpop.f32.mrf.mxu0
        %v596 = vadd.f32 %v395, %v595
        %v597 = vpop.f32.mrf.mxu0
        %598 = vmatprep.mubr.f32.mxu0 0.0
        %599 = vmatmul.mubr.f32.gmra.mxu0 %v423
        %v600 = vpop.f32.mrf.mxu0
        %v601 = vadd.f32 %v395, %v600
        %v602 = vpop.f32.mrf.mxu0
        %603 = vmatprep.mubr.f32.mxu0 0.0
        %604 = vmatmul.mubr.f32.gmra.mxu0 %v426
        %v605 = vpop.f32.mrf.mxu0
        %v606 = vadd.f32 %v395, %v605
        %v607 = vpop.f32.mrf.mxu0
        %608 = vmatprep.mubr.f32.mxu0 0.0
        %609 = vmatmul.mubr.f32.gmra.mxu0 %v429
        %v610 = vpop.f32.mrf.mxu0
        %v611 = vadd.f32 %v395, %v610
        %v612 = vpop.f32.mrf.mxu0
        %613 = vmatprep.mubr.f32.mxu0 0.0
        %614 = vmatmul.mubr.f32.gmra.mxu0 %v432
        %v615 = vpop.f32.mrf.mxu0
        %v616 = vadd.f32 %v395, %v615
        %v617 = vpop.f32.mrf.mxu0
        %618 = vmatprep.mubr.f32.mxu0 0.0
        %619 = vmatmul.mubr.f32.gmra.mxu0 %v435
        %v620 = vpop.f32.mrf.mxu0
        %v621 = vadd.f32 %v395, %v620
        %v622 = vpop.f32.mrf.mxu0
        %623 = vmatprep.mubr.f32.mxu0 0.0
        %624 = vmatmul.mubr.f32.gmra.mxu0 %v438
        %v625 = vpop.f32.mrf.mxu0
        %v626 = vadd.f32 %v395, %v625
        %v627 = vpop.f32.mrf.mxu0
        %628 = vmatprep.mubr.f32.mxu0 0.0
        %629 = vmatmul.mubr.f32.gmra.mxu0 %v441
        %v630 = vpop.f32.mrf.mxu0
        %v631 = vadd.f32 %v395, %v630
        %v632 = vpop.f32.mrf.mxu0
        %633 = vmatprep.mubr.f32.mxu0 0.0
        %634 = vmatmul.mubr.f32.gmra.mxu0 %v444
        %v635 = vpop.f32.mrf.mxu0
        %v636 = vadd.f32 %v395, %v635
        %v637 = vpop.f32.mrf.mxu0
        %638 = vmatprep.mubr.f32.mxu0 0.0
        %639 = vmatmul.mubr.f32.gmra.mxu0 %v447
        %v640 = vpop.f32.mrf.mxu0
        %v641 = vadd.f32 %v395, %v640
        %v642 = vpop.f32.mrf.mxu0
        %643 = vmatprep.mubr.f32.mxu0 0.0
        %644 = vmatmul.mubr.f32.gmra.mxu0 %v450
        %v645 = vpop.f32.mrf.mxu0
        %v646 = vadd.f32 %v395, %v645
        %v647 = vpop.f32.mrf.mxu0
        %648 = vmatprep.mubr.f32.mxu0 0.0
        %649 = vmatmul.mubr.f32.gmra.mxu0 %v453
        %v650 = vpop.f32.mrf.mxu0
        %v651 = vadd.f32 %v395, %v650
        %v652 = vpop.f32.mrf.mxu0
        %653 = vmatprep.mubr.f32.mxu0 0.0
        %654 = vmatmul.mubr.f32.gmra.mxu0 %v456
        %v655 = vpop.f32.mrf.mxu0
        %v656 = vadd.f32 %v395, %v655
        %v657 = vpop.f32.mrf.mxu0
        %658 = vmatprep.mubr.f32.mxu0 0.0
        %659 = vmatmul.mubr.f32.gmra.mxu0 %v459
        %v660 = vpop.f32.mrf.mxu0
        %v661 = vadd.f32 %v395, %v660
        %v662 = vpop.f32.mrf.mxu0
        %663 = vmatprep.mubr.f32.mxu0 0.0
        %664 = vmatmul.mubr.f32.gmra.mxu0 %v462
        %v665 = vpop.f32.mrf.mxu0
        %v666 = vadd.f32 %v395, %v665
        %v667 = vpop.f32.mrf.mxu0
        %668 = vmatprep.mubr.f32.mxu0 0.0
        %669 = vmatmul.mubr.f32.gmra.mxu0 %v465
        %v670 = vpop.f32.mrf.mxu0
        %v671 = vadd.f32 %v395, %v670
        %v672 = vpop.f32.mrf.mxu0
        %673 = vmatprep.mubr.f32.mxu0 0.0
        %674 = vmatmul.mubr.f32.gmra.mxu0 %v468
        %v675 = vpop.f32.mrf.mxu0
        %v676 = vadd.f32 %v395, %v675
        %v677 = vpop.f32.mrf.mxu0
        %678 = vmatprep.mubr.f32.mxu0 0.0
        %679 = vmatmul.mubr.f32.gmra.mxu0 %v471
        %v680 = vpop.f32.mrf.mxu0
        %v681 = vadd.f32 %v395, %v680
        %v682 = vpop.f32.mrf.mxu0
        %683 = vmatprep.mubr.f32.mxu0 0.0
        %684 = vmatmul.mubr.f32.gmra.mxu0 %v474
        %v685 = vpop.f32.mrf.mxu0
        %v686 = vadd.f32 %v395, %v685
        %v687 = vpop.f32.mrf.mxu0
        %688 = vmatprep.mubr.f32.mxu0 0.0
        %689 = vmatmul.mubr.f32.gmra.mxu0 %v477
        %v690 = vpop.f32.mrf.mxu0
        %v691 = vadd.f32 %v395, %v690
        %v692 = vpop.f32.mrf.mxu0
        %693 = vmatprep.mubr.f32.mxu0 0.0
        %694 = vmatmul.mubr.f32.gmra.mxu0 %v480
        %v695 = vpop.f32.mrf.mxu0
        %v696 = vadd.f32 %v395, %v695
        %v697 = vpop.f32.mrf.mxu0
        %698 = vmatprep.mubr.f32.mxu0 0.0
        %699 = vmatmul.mubr.f32.gmra.mxu0 %v483
        %v700 = vpop.f32.mrf.mxu0
        %v701 = vadd.f32 %v395, %v700
        %v702 = vpop.f32.mrf.mxu0
        %703 = vmatprep.mubr.f32.mxu0 0.0
        %704 = vmatmul.mubr.f32.gmra.mxu0 %v486
        %v705 = vpop.f32.mrf.mxu0
        %v706 = vadd.f32 %v395, %v705
        %v707 = vpop.f32.mrf.mxu0
        %708 = vmatprep.mubr.f32.mxu0 0.0
        %709 = vmatmul.mubr.f32.gmra.mxu0 %v489
        %v710 = vpop.f32.mrf.mxu0
        %v711 = vadd.f32 %v395, %v710
        %v712 = vpop.f32.mrf.mxu0
        %713 = vmatprep.mubr.f32.mxu0 0.0
        %714 = vmatmul.mubr.f32.gmra.mxu0 %v492
        %v715 = vpop.f32.mrf.mxu0
        %v716 = vadd.f32 %v395, %v715
        %v717 = vpop.f32.mrf.mxu0
        %718 = vdwg.mxu0
        %719 = vmax.xlane.f32.xlu0 %v561
        %v720 = vpop.xlane.xlu0 %719
        %721 = vmax.xlane.f32.xlu0 %v566
        %v722 = vpop.xlane.xlu0 %721
        %723 = vmax.xlane.f32.xlu0 %v571
        %v724 = vpop.xlane.xlu0 %723
        %725 = vmax.xlane.f32.xlu0 %v576
        %v726 = vpop.xlane.xlu0 %725
        %727 = vmax.xlane.f32.xlu0 %v581
        %v728 = vpop.xlane.xlu0 %727
        %729 = vmax.xlane.f32.xlu0 %v586
        %v730 = vpop.xlane.xlu0 %729
        %731 = vmax.xlane.f32.xlu0 %v591
        %v732 = vpop.xlane.xlu0 %731
        %733 = vmax.xlane.f32.xlu0 %v596
        %v734 = vpop.xlane.xlu0 %733
        %735 = vmax.xlane.f32.xlu0 %v601
        %v736 = vpop.xlane.xlu0 %735
        %737 = vmax.xlane.f32.xlu0 %v606
        %v738 = vpop.xlane.xlu0 %737
        %739 = vmax.xlane.f32.xlu0 %v611
        %v740 = vpop.xlane.xlu0 %739
        %741 = vmax.xlane.f32.xlu0 %v616
        %v742 = vpop.xlane.xlu0 %741
        %743 = vmax.xlane.f32.xlu0 %v621
        %v744 = vpop.xlane.xlu0 %743
        %745 = vmax.xlane.f32.xlu0 %v626
        %v746 = vpop.xlane.xlu0 %745
        %747 = vmax.xlane.f32.xlu0 %v631
        %v748 = vpop.xlane.xlu0 %747
        %749 = vmax.xlane.f32.xlu0 %v636
        %v750 = vpop.xlane.xlu0 %749
        %751 = vmax.xlane.f32.xlu0 %v641
        %v752 = vpop.xlane.xlu0 %751
        %753 = vmax.xlane.f32.xlu0 %v646
        %v754 = vpop.xlane.xlu0 %753
        %755 = vmax.xlane.f32.xlu0 %v651
        %v756 = vpop.xlane.xlu0 %755
        %757 = vmax.xlane.f32.xlu0 %v656
        %v758 = vpop.xlane.xlu0 %757
        %759 = vmax.xlane.f32.xlu0 %v661
        %v760 = vpop.xlane.xlu0 %759
        %761 = vmax.xlane.f32.xlu0 %v666
        %v762 = vpop.xlane.xlu0 %761
        %763 = vmax.xlane.f32.xlu0 %v671
        %v764 = vpop.xlane.xlu0 %763
        %765 = vmax.xlane.f32.xlu0 %v676
        %v766 = vpop.xlane.xlu0 %765
        %767 = vmax.xlane.f32.xlu0 %v681
        %v768 = vpop.xlane.xlu0 %767
        %769 = vmax.xlane.f32.xlu0 %v686
        %v770 = vpop.xlane.xlu0 %769
        %771 = vmax.xlane.f32.xlu0 %v691
        %v772 = vpop.xlane.xlu0 %771
        %773 = vmax.xlane.f32.xlu0 %v696
        %v774 = vpop.xlane.xlu0 %773
        %775 = vmax.xlane.f32.xlu0 %v701
        %v776 = vpop.xlane.xlu0 %775
        %777 = vmax.xlane.f32.xlu0 %v706
        %v778 = vpop.xlane.xlu0 %777
        %779 = vmax.xlane.f32.xlu0 %v711
        %v780 = vpop.xlane.xlu0 %779
        %781 = vmax.xlane.f32.xlu0 %v716
        %v782 = vpop.xlane.xlu0 %781
        %v783 = vsub.f32 %v561, %v720
        %v784 = vsub.f32 %v566, %v722
        %v785 = vsub.f32 %v571, %v724
        %v786 = vsub.f32 %v576, %v726
        %v787 = vsub.f32 %v581, %v728
        %v788 = vsub.f32 %v586, %v730
        %v789 = vsub.f32 %v591, %v732
        %v790 = vsub.f32 %v596, %v734
        %v791 = vsub.f32 %v601, %v736
        %v792 = vsub.f32 %v606, %v738
        %v793 = vsub.f32 %v611, %v740
        %v794 = vsub.f32 %v616, %v742
        %v795 = vsub.f32 %v621, %v744
        %v796 = vsub.f32 %v626, %v746
        %v797 = vsub.f32 %v631, %v748
        %v798 = vsub.f32 %v636, %v750
        %v799 = vsub.f32 %v641, %v752
        %v800 = vsub.f32 %v646, %v754
        %v801 = vsub.f32 %v651, %v756
        %v802 = vsub.f32 %v656, %v758
        %v803 = vsub.f32 %v661, %v760
        %v804 = vsub.f32 %v666, %v762
        %v805 = vsub.f32 %v671, %v764
        %v806 = vsub.f32 %v676, %v766
        %v807 = vsub.f32 %v681, %v768
        %v808 = vsub.f32 %v686, %v770
        %v809 = vsub.f32 %v691, %v772
        %v810 = vsub.f32 %v696, %v774
        %v811 = vsub.f32 %v701, %v776
        %v812 = vsub.f32 %v706, %v778
        %v813 = vsub.f32 %v711, %v780
        %v814 = vsub.f32 %v716, %v782
        %v815 = vmul.f32 %v783, 1.442695
        %v816 = vpow.pop %v815
        %v817 = vmul.f32 %v784, 1.442695
        %v818 = vpow.pop %v817
        %v819 = vmul.f32 %v785, 1.442695
        %v820 = vpow.pop %v819
        %v821 = vmul.f32 %v786, 1.442695
        %v822 = vpow.pop %v821
        %v823 = vmul.f32 %v787, 1.442695
        %v824 = vpow.pop %v823
        %v825 = vmul.f32 %v788, 1.442695
        %v826 = vpow.pop %v825
        %v827 = vmul.f32 %v789, 1.442695
        %v828 = vpow.pop %v827
        %v829 = vmul.f32 %v790, 1.442695
        %v830 = vpow.pop %v829
        %v831 = vmul.f32 %v791, 1.442695
        %v832 = vpow.pop %v831
        %v833 = vmul.f32 %v792, 1.442695
        %v834 = vpow.pop %v833
        %v835 = vmul.f32 %v793, 1.442695
        %v836 = vpow.pop %v835
        %v837 = vmul.f32 %v794, 1.442695
        %v838 = vpow.pop %v837
        %v839 = vmul.f32 %v795, 1.442695
        %v840 = vpow.pop %v839
        %v841 = vmul.f32 %v796, 1.442695
        %v842 = vpow.pop %v841
        %v843 = vmul.f32 %v797, 1.442695
        %v844 = vpow.pop %v843
        %v845 = vmul.f32 %v798, 1.442695
        %v846 = vpow.pop %v845
        %v847 = vmul.f32 %v799, 1.442695
        %v848 = vpow.pop %v847
        %v849 = vmul.f32 %v800, 1.442695
        %v850 = vpow.pop %v849
        %v851 = vmul.f32 %v801, 1.442695
        %v852 = vpow.pop %v851
        %v853 = vmul.f32 %v802, 1.442695
        %v854 = vpow.pop %v853
        %v855 = vmul.f32 %v803, 1.442695
        %v856 = vpow.pop %v855
        %v857 = vmul.f32 %v804, 1.442695
        %v858 = vpow.pop %v857
        %v859 = vmul.f32 %v805, 1.442695
        %v860 = vpow.pop %v859
        %v861 = vmul.f32 %v806, 1.442695
        %v862 = vpow.pop %v861
        %v863 = vmul.f32 %v807, 1.442695
        %v864 = vpow.pop %v863
        %v865 = vmul.f32 %v808, 1.442695
        %v866 = vpow.pop %v865
        %v867 = vmul.f32 %v809, 1.442695
        %v868 = vpow.pop %v867
        %v869 = vmul.f32 %v810, 1.442695
        %v870 = vpow.pop %v869
        %v871 = vmul.f32 %v811, 1.442695
        %v872 = vpow.pop %v871
        %v873 = vmul.f32 %v812, 1.442695
        %v874 = vpow.pop %v873
        %v875 = vmul.f32 %v813, 1.442695
        %v876 = vpow.pop %v875
        %v877 = vmul.f32 %v814, 1.442695
        %v878 = vpow.pop %v877
        %879 = vadd.xlane.f32.xlu0 %v816
        %v880 = vpop.xlane.xlu0 %879
        %881 = vadd.xlane.f32.xlu0 %v818
        %v882 = vpop.xlane.xlu0 %881
        %883 = vadd.xlane.f32.xlu0 %v820
        %v884 = vpop.xlane.xlu0 %883
        %885 = vadd.xlane.f32.xlu0 %v822
        %v886 = vpop.xlane.xlu0 %885
        %887 = vadd.xlane.f32.xlu0 %v824
        %v888 = vpop.xlane.xlu0 %887
        %889 = vadd.xlane.f32.xlu0 %v826
        %v890 = vpop.xlane.xlu0 %889
        %891 = vadd.xlane.f32.xlu0 %v828
        %v892 = vpop.xlane.xlu0 %891
        %893 = vadd.xlane.f32.xlu0 %v830
        %v894 = vpop.xlane.xlu0 %893
        %895 = vadd.xlane.f32.xlu0 %v832
        %v896 = vpop.xlane.xlu0 %895
        %897 = vadd.xlane.f32.xlu0 %v834
        %v898 = vpop.xlane.xlu0 %897
        %899 = vadd.xlane.f32.xlu0 %v836
        %v900 = vpop.xlane.xlu0 %899
        %901 = vadd.xlane.f32.xlu0 %v838
        %v902 = vpop.xlane.xlu0 %901
        %903 = vadd.xlane.f32.xlu0 %v840
        %v904 = vpop.xlane.xlu0 %903
        %905 = vadd.xlane.f32.xlu0 %v842
        %v906 = vpop.xlane.xlu0 %905
        %907 = vadd.xlane.f32.xlu0 %v844
        %v908 = vpop.xlane.xlu0 %907
        %909 = vadd.xlane.f32.xlu0 %v846
        %v910 = vpop.xlane.xlu0 %909
        %911 = vadd.xlane.f32.xlu0 %v848
        %v912 = vpop.xlane.xlu0 %911
        %913 = vadd.xlane.f32.xlu0 %v850
        %v914 = vpop.xlane.xlu0 %913
        %915 = vadd.xlane.f32.xlu0 %v852
        %v916 = vpop.xlane.xlu0 %915
        %917 = vadd.xlane.f32.xlu0 %v854
        %v918 = vpop.xlane.xlu0 %917
        %919 = vadd.xlane.f32.xlu0 %v856
        %v920 = vpop.xlane.xlu0 %919
        %921 = vadd.xlane.f32.xlu0 %v858
        %v922 = vpop.xlane.xlu0 %921
        %923 = vadd.xlane.f32.xlu0 %v860
        %v924 = vpop.xlane.xlu0 %923
        %925 = vadd.xlane.f32.xlu0 %v862
        %v926 = vpop.xlane.xlu0 %925
        %927 = vadd.xlane.f32.xlu0 %v864
        %v928 = vpop.xlane.xlu0 %927
        %929 = vadd.xlane.f32.xlu0 %v866
        %v930 = vpop.xlane.xlu0 %929
        %931 = vadd.xlane.f32.xlu0 %v868
        %v932 = vpop.xlane.xlu0 %931
        %933 = vadd.xlane.f32.xlu0 %v870
        %v934 = vpop.xlane.xlu0 %933
        %935 = vadd.xlane.f32.xlu0 %v872
        %v936 = vpop.xlane.xlu0 %935
        %937 = vadd.xlane.f32.xlu0 %v874
        %v938 = vpop.xlane.xlu0 %937
        %939 = vadd.xlane.f32.xlu0 %v876
        %v940 = vpop.xlane.xlu0 %939
        %941 = vadd.xlane.f32.xlu0 %v878
        %v942 = vpop.xlane.xlu0 %941
        %v943 = vrcp.pop %v880
        %v944 = vrcp.pop %v882
        %v945 = vrcp.pop %v884
        %v946 = vrcp.pop %v886
        %v947 = vrcp.pop %v888
        %v948 = vrcp.pop %v890
        %v949 = vrcp.pop %v892
        %v950 = vrcp.pop %v894
        %v951 = vrcp.pop %v896
        %v952 = vrcp.pop %v898
        %v953 = vrcp.pop %v900
        %v954 = vrcp.pop %v902
        %v955 = vrcp.pop %v904
        %v956 = vrcp.pop %v906
        %v957 = vrcp.pop %v908
        %v958 = vrcp.pop %v910
        %v959 = vrcp.pop %v912
        %v960 = vrcp.pop %v914
        %v961 = vrcp.pop %v916
        %v962 = vrcp.pop %v918
        %v963 = vrcp.pop %v920
        %v964 = vrcp.pop %v922
        %v965 = vrcp.pop %v924
        %v966 = vrcp.pop %v926
        %v967 = vrcp.pop %v928
        %v968 = vrcp.pop %v930
        %v969 = vrcp.pop %v932
        %v970 = vrcp.pop %v934
        %v971 = vrcp.pop %v936
        %v972 = vrcp.pop %v938
        %v973 = vrcp.pop %v940
        %v974 = vrcp.pop %v942
        %v1007 = vlaneseq
        %v1008 = vand.u32 %v1007, 127
        %v1009 = vlaneseq
        %v1010 = vshrl.u32 %v1009, 7
        %v1011 = vsub.s32 %v1008, %v1010
        %v1012 = vrot.slane %v943, %v1011
        %v1013 = vadd.s32 %v1008, 4294967288
        %v1014 = vlaneseq
        %v1015 = vshrl.u32 %v1014, 7
        %v1016 = vsub.s32 %v1013, %v1015
        %v1017 = vrot.slane %v944, %v1016
        %vm1018 = vcmask 130112
        %v1019 = vsel %vm1018, %v1017, %v1012
        %v1020 = vadd.s32 %v1008, 4294967280
        %v1021 = vlaneseq
        %v1022 = vshrl.u32 %v1021, 7
        %v1023 = vsub.s32 %v1020, %v1022
        %v1024 = vrot.slane %v945, %v1023
        %vm1025 = vcmask 195712
        %v1026 = vsel %vm1025, %v1024, %v1019
        %v1027 = vadd.s32 %v1008, 4294967272
        %v1028 = vlaneseq
        %v1029 = vshrl.u32 %v1028, 7
        %v1030 = vsub.s32 %v1027, %v1029
        %v1031 = vrot.slane %v946, %v1030
        %vm1032 = vcmask 261312
        %v1033 = vsel %vm1032, %v1031, %v1026
        %v1034 = vadd.s32 %v1008, 4294967264
        %v1035 = vlaneseq
        %v1036 = vshrl.u32 %v1035, 7
        %v1037 = vsub.s32 %v1034, %v1036
        %v1038 = vrot.slane %v947, %v1037
        %vm1039 = vcmask 326912
        %v1040 = vsel %vm1039, %v1038, %v1033
        %v1041 = vadd.s32 %v1008, 4294967256
        %v1042 = vlaneseq
        %v1043 = vshrl.u32 %v1042, 7
        %v1044 = vsub.s32 %v1041, %v1043
        %v1045 = vrot.slane %v948, %v1044
        %vm1046 = vcmask 392512
        %v1047 = vsel %vm1046, %v1045, %v1040
        %v1048 = vadd.s32 %v1008, 4294967248
        %v1049 = vlaneseq
        %v1050 = vshrl.u32 %v1049, 7
        %v1051 = vsub.s32 %v1048, %v1050
        %v1052 = vrot.slane %v949, %v1051
        %vm1053 = vcmask 458112
        %v1054 = vsel %vm1053, %v1052, %v1047
        %v1055 = vadd.s32 %v1008, 4294967240
        %v1056 = vlaneseq
        %v1057 = vshrl.u32 %v1056, 7
        %v1058 = vsub.s32 %v1055, %v1057
        %v1059 = vrot.slane %v950, %v1058
        %vm1060 = vcmask 523712
        %v1061 = vsel %vm1060, %v1059, %v1054
        %v1062 = vadd.s32 %v1008, 4294967232
        %v1063 = vlaneseq
        %v1064 = vshrl.u32 %v1063, 7
        %v1065 = vsub.s32 %v1062, %v1064
        %v1066 = vrot.slane %v951, %v1065
        %vm1067 = vcmask 589312
        %v1068 = vsel %vm1067, %v1066, %v1061
        %v1069 = vadd.s32 %v1008, 4294967224
        %v1070 = vlaneseq
        %v1071 = vshrl.u32 %v1070, 7
        %v1072 = vsub.s32 %v1069, %v1071
        %v1073 = vrot.slane %v952, %v1072
        %vm1074 = vcmask 654912
        %v1075 = vsel %vm1074, %v1073, %v1068
        %v1076 = vadd.s32 %v1008, 4294967216
        %v1077 = vlaneseq
        %v1078 = vshrl.u32 %v1077, 7
        %v1079 = vsub.s32 %v1076, %v1078
        %v1080 = vrot.slane %v953, %v1079
        %vm1081 = vcmask 720512
        %v1082 = vsel %vm1081, %v1080, %v1075
        %v1083 = vadd.s32 %v1008, 4294967208
        %v1084 = vlaneseq
        %v1085 = vshrl.u32 %v1084, 7
        %v1086 = vsub.s32 %v1083, %v1085
        %v1087 = vrot.slane %v954, %v1086
        %vm1088 = vcmask 786112
        %v1089 = vsel %vm1088, %v1087, %v1082
        %v1090 = vadd.s32 %v1008, 4294967200
        %v1091 = vlaneseq
        %v1092 = vshrl.u32 %v1091, 7
        %v1093 = vsub.s32 %v1090, %v1092
        %v1094 = vrot.slane %v955, %v1093
        %vm1095 = vcmask 851712
        %v1096 = vsel %vm1095, %v1094, %v1089
        %v1097 = vadd.s32 %v1008, 4294967192
        %v1098 = vlaneseq
        %v1099 = vshrl.u32 %v1098, 7
        %v1100 = vsub.s32 %v1097, %v1099
        %v1101 = vrot.slane %v956, %v1100
        %vm1102 = vcmask 917312
        %v1103 = vsel %vm1102, %v1101, %v1096
        %v1104 = vadd.s32 %v1008, 4294967184
        %v1105 = vlaneseq
        %v1106 = vshrl.u32 %v1105, 7
        %v1107 = vsub.s32 %v1104, %v1106
        %v1108 = vrot.slane %v957, %v1107
        %vm1109 = vcmask 982912
        %v1110 = vsel %vm1109, %v1108, %v1103
        %v1111 = vadd.s32 %v1008, 4294967176
        %v1112 = vlaneseq
        %v1113 = vshrl.u32 %v1112, 7
        %v1114 = vsub.s32 %v1111, %v1113
        %v1115 = vrot.slane %v958, %v1114
        %vm1116 = vcmask 1048512
        %v1117 = vsel %vm1116, %v1115, %v1110
        %v1118 = vlaneseq
        %v1119 = vshrl.u32 %v1118, 7
        %v1120 = vsub.s32 %v1008, %v1119
        %v1121 = vrot.slane %v959, %v1120
        %v1122 = vlaneseq
        %v1123 = vshrl.u32 %v1122, 7
        %v1124 = vsub.s32 %v1013, %v1123
        %v1125 = vrot.slane %v960, %v1124
        %v1126 = vsel %vm1018, %v1125, %v1121
        %v1127 = vlaneseq
        %v1128 = vshrl.u32 %v1127, 7
        %v1129 = vsub.s32 %v1020, %v1128
        %v1130 = vrot.slane %v961, %v1129
        %v1131 = vsel %vm1025, %v1130, %v1126
        %v1132 = vlaneseq
        %v1133 = vshrl.u32 %v1132, 7
        %v1134 = vsub.s32 %v1027, %v1133
        %v1135 = vrot.slane %v962, %v1134
        %v1136 = vsel %vm1032, %v1135, %v1131
        %v1137 = vlaneseq
        %v1138 = vshrl.u32 %v1137, 7
        %v1139 = vsub.s32 %v1034, %v1138
        %v1140 = vrot.slane %v963, %v1139
        %v1141 = vsel %vm1039, %v1140, %v1136
        %v1142 = vlaneseq
        %v1143 = vshrl.u32 %v1142, 7
        %v1144 = vsub.s32 %v1041, %v1143
        %v1145 = vrot.slane %v964, %v1144
        %v1146 = vsel %vm1046, %v1145, %v1141
        %v1147 = vlaneseq
        %v1148 = vshrl.u32 %v1147, 7
        %v1149 = vsub.s32 %v1048, %v1148
        %v1150 = vrot.slane %v965, %v1149
        %v1151 = vsel %vm1053, %v1150, %v1146
        %v1152 = vlaneseq
        %v1153 = vshrl.u32 %v1152, 7
        %v1154 = vsub.s32 %v1055, %v1153
        %v1155 = vrot.slane %v966, %v1154
        %v1156 = vsel %vm1060, %v1155, %v1151
        %v1157 = vlaneseq
        %v1158 = vshrl.u32 %v1157, 7
        %v1159 = vsub.s32 %v1062, %v1158
        %v1160 = vrot.slane %v967, %v1159
        %v1161 = vsel %vm1067, %v1160, %v1156
        %v1162 = vlaneseq
        %v1163 = vshrl.u32 %v1162, 7
        %v1164 = vsub.s32 %v1069, %v1163
        %v1165 = vrot.slane %v968, %v1164
        %v1166 = vsel %vm1074, %v1165, %v1161
        %v1167 = vlaneseq
        %v1168 = vshrl.u32 %v1167, 7
        %v1169 = vsub.s32 %v1076, %v1168
        %v1170 = vrot.slane %v969, %v1169
        %v1171 = vsel %vm1081, %v1170, %v1166
        %v1172 = vlaneseq
        %v1173 = vshrl.u32 %v1172, 7
        %v1174 = vsub.s32 %v1083, %v1173
        %v1175 = vrot.slane %v970, %v1174
        %v1176 = vsel %vm1088, %v1175, %v1171
        %v1177 = vlaneseq
        %v1178 = vshrl.u32 %v1177, 7
        %v1179 = vsub.s32 %v1090, %v1178
        %v1180 = vrot.slane %v971, %v1179
        %v1181 = vsel %vm1095, %v1180, %v1176
        %v1182 = vlaneseq
        %v1183 = vshrl.u32 %v1182, 7
        %v1184 = vsub.s32 %v1097, %v1183
        %v1185 = vrot.slane %v972, %v1184
        %v1186 = vsel %vm1102, %v1185, %v1181
        %v1187 = vlaneseq
        %v1188 = vshrl.u32 %v1187, 7
        %v1189 = vsub.s32 %v1104, %v1188
        %v1190 = vrot.slane %v973, %v1189
        %v1191 = vsel %vm1109, %v1190, %v1186
        %v1192 = vlaneseq
        %v1193 = vshrl.u32 %v1192, 7
        %v1194 = vsub.s32 %v1111, %v1193
        %v1195 = vrot.slane %v974, %v1194
        %v1196 = vsel %vm1116, %v1195, %v1191
        %vm1197 = vcmask 1041409
        %v1198 = vsel %vm1197, %v1196, %v1117
        %1200 = vst [vmem:[%s352] sm:$0x3] %v1198
        %v1201 = vadd.f32 %v561, %v566
        %v1202 = vadd.f32 %v1201, %v571
        %v1203 = vadd.f32 %v1202, %v576
        %v1204 = vadd.f32 %v1203, %v581
        %v1205 = vadd.f32 %v1204, %v586
        %v1206 = vadd.f32 %v1205, %v591
        %v1207 = vadd.f32 %v1206, %v596
        %v1208 = vadd.f32 %v1207, %v601
        %v1209 = vadd.f32 %v1208, %v606
        %v1210 = vadd.f32 %v1209, %v611
        %v1211 = vadd.f32 %v1210, %v616
        %v1212 = vadd.f32 %v1211, %v621
        %v1213 = vadd.f32 %v1212, %v626
        %v1214 = vadd.f32 %v1213, %v631
        %v1215 = vadd.f32 %v1214, %v636
        %v1216 = vrot.slane %v1215, 4
        %v1217 = vadd.f32 %v1215, %v1216
        %v1218 = vrot.slane %v1217, 2
        %v1219 = vadd.f32 %v1217, %v1218
        %v1220 = vrot.slane %v1219, 1
        %v1221 = vadd.f32 %v1219, %v1220
        %v1222 = vadd.f32 %v641, %v646
        %v1223 = vadd.f32 %v1222, %v651
        %v1224 = vadd.f32 %v1223, %v656
        %v1225 = vadd.f32 %v1224, %v661
        %v1226 = vadd.f32 %v1225, %v666
        %v1227 = vadd.f32 %v1226, %v671
        %v1228 = vadd.f32 %v1227, %v676
        %v1229 = vadd.f32 %v1228, %v681
        %v1230 = vadd.f32 %v1229, %v686
        %v1231 = vadd.f32 %v1230, %v691
        %v1232 = vadd.f32 %v1231, %v696
        %v1233 = vadd.f32 %v1232, %v701
        %v1234 = vadd.f32 %v1233, %v706
        %v1235 = vadd.f32 %v1234, %v711
        %v1236 = vadd.f32 %v1235, %v716
        %v1237 = vrot.slane %v1236, 4
        %v1238 = vadd.f32 %v1236, %v1237
        %v1239 = vrot.slane %v1238, 2
        %v1240 = vadd.f32 %v1238, %v1239
        %v1241 = vrot.slane %v1240, 1
        %v1242 = vadd.f32 %v1240, %v1241
        %p1243 = scmp.eq.s32.totalorder %s20, 0
        // Predicated region
        $region71: #{tpu_custom_call.1} parent=65 // pred_check
          %p1244 = pneg %p1243
        $region72: #{tpu_custom_call.1} parent=65 // pred_check_branch
          %1246 = sbr.rel (%p1244) target = $region74
        $region73: #{tpu_custom_call.1} parent=65 // pred_region
          %1247 = vst [vmem:[#allocation5] sm:$0x3] 0.0
        $region74: #{tpu_custom_call.1} parent=65 // pred_fallthru
          _
        %v1248 = vld [vmem:[#allocation5] sm:$0x3]
        %v1251 = vsel %vm1197, %v1242, %v1221
        %v1253 = vadd.f32 %v1248, %v1251
        %1254 = vst [vmem:[#allocation5] sm:$0x3] %v1253
        %p1255 = scmp.eq.s32.totalorder %s20, 1
        // Predicated region
        $region75: #{tpu_custom_call.1} parent=65 // pred_check
          %p1256 = pneg %p1255
        $region76: #{tpu_custom_call.1} parent=65 // pred_check_branch
          %1258 = sbr.rel (%p1256) target = $region78
        $region77: #{tpu_custom_call.1} parent=65 // pred_region
          %v1259 = vld [vmem:[#allocation5] sm:$0x3]
          %v1260 = vmul.f32 %v1259, 0.00390625
          %1261 = vst [vmem:[#allocation5] sm:$0x3] %v1260
        $region78: #{tpu_custom_call.1} parent=65 // pred_fallthru
          _
        %s1262 = sand.u32 %s96, 1
        %s1263 = scalar_lea.sflag [#allocation4], %s1262
        %s1264 = sand.u32 %s96, 1
        %s1265 = smul.addr %s1264, 2
        %s1266 = scalar_lea.vmem [#allocation3], %s1265
        // Predicated region
        $region79: #{tpu_custom_call.1} parent=65 // pred_check
          %p1267 = pneg %p106
        $region80: #{tpu_custom_call.1} parent=65 // pred_check_branch
          %1269 = sbr.rel (%p1267) target = $region82
        $region81: #{tpu_custom_call.1} parent=65 // pred_region
          %s1271 = ssub.s32 32, 32
          %1272 = vsyncadd %s1263, %s1271
          %s1273 = smul.addr %s20, 32
          %s1274 = scalar_lea.hbm %s3, %s1273
          %s1276 = sshll.u32 %s1266, 4
          %s1277 = int_to_ptr.vmem [resolvable:$true] %s1276
          %1279 = dma.vmem_to_hbm [thread:$0]  %s1277, 32, %s1274, %s1263
        $region82: #{tpu_custom_call.1} parent=65 // pred_fallthru
          _
        // Predicated region
        $region83: #{tpu_custom_call.1} parent=65 // pred_check
          %p1280 = pneg %p127
        $region84: #{tpu_custom_call.1} parent=65 // pred_check_branch
          %1282 = sbr.rel (%p1280) target = $region86
        $region85: #{tpu_custom_call.1} parent=65 // pred_region
          %s1284 = ssub.s32 32, 32
          %1285 = vsyncadd [#allocation6], %s1284
          %s1287 = sshll.u32 [#allocation5], 4
          %s1288 = int_to_ptr.vmem [resolvable:$true] %s1287
          %1290 = dma.vmem_to_hbm [thread:$0]  %s1288, 32, %s4, [#allocation6]
        $region86: #{tpu_custom_call.1} parent=65 // pred_fallthru
          _
        // Predicated region
        $region87: #{tpu_custom_call.1} parent=65 // pred_check
          %p1291 = pneg %p127
        $region88: #{tpu_custom_call.1} parent=65 // pred_check_branch
          %1293 = sbr.rel (%p1291) target = $region90
        $region89: #{tpu_custom_call.1} parent=65 // pred_region
          %1294 = dma.done [#allocation6], 32
        $region90: #{tpu_custom_call.1} parent=65 // pred_fallthru
          _
      $region66: #{tpu_custom_call.1} parent=5 // pred_fallthru
        _
      %p1295 = scmp.le.s32.totalorder 2, %s15
      // Predicated region
      $region91: #{tpu_custom_call.1} parent=5 // pred_check
        %p1296 = pneg %p1295
      $region92: #{tpu_custom_call.1} parent=5 // pred_check_branch
        %1298 = sbr.rel (%p1296) target = $region94
      $region93: #{tpu_custom_call.1} parent=5 // pred_region
        %s1299 = ssub.s32 %s15, 2
        // Predicated region
        $region95: #{tpu_custom_call.1} parent=93 // pred_check
          %p1300 = pneg %p112
        $region96: #{tpu_custom_call.1} parent=93 // pred_check_branch
          %1302 = sbr.rel (%p1300) target = $region98
        $region97: #{tpu_custom_call.1} parent=93 // pred_region
          %s1303 = sand.u32 %s97, 1
          %s1304 = scalar_lea.sflag [#allocation4], %s1303
          %s1305 = sand.u32 %s97, 1
          %s1306 = smul.addr %s1305, 2
          %s1307 = scalar_lea.vmem [#allocation3], %s1306
          %1308 = dma.done %s1304, 32
        $region98: #{tpu_custom_call.1} parent=93 // pred_fallthru
          _
      $region94: #{tpu_custom_call.1} parent=5 // pred_fallthru
        _
    $region6: #{tpu_custom_call.1} parent=1 // loop_footer
      %s19 = sadd.s32 1, %s15
    $region7: #{tpu_custom_call.1} parent=1 // loop_footer_branch
      %14 = sbr.rel target = $region3
    $region8: #{tpu_custom_call.1} parent=1 // loop_exit
      _
    %1309 = vsyncpa [#allocation4], 1
    %s1310 = scalar_lea.sflag [#allocation4], 1
    %1311 = vsyncpa %s1310, 1
    %1312 = vsyncpa [#allocation6], 1

</llo_original>
